<compile_context>
chip_gen: v7x
topology: tpu7x:2x2x1
jax: 0.10.0
libtpu: 0.0.40
codegen_flags: <defaults>
</compile_context>

<pallas_src>
import functools

import jax
import jax.numpy as jnp
from jax.experimental import pallas as pl
from jax.experimental.pallas import tpu as pltpu


def _round_up(x, m):
    return ((x + m - 1) // m) * m


def mlp_kernel(x_ref, w1_ref, b1_ref, w2_ref, b2_ref, w3_ref, b3_ref, o_ref):
    # Layer 1: bf16 [tm, Din] @ bf16 [Din, 128] -> fp32 acc -> +b -> ReLU
    h1 = jnp.dot(x_ref[...], w1_ref[...], preferred_element_type=jnp.float32)
    h1 = jnp.maximum(h1 + b1_ref[...], 0.0).astype(jnp.bfloat16)
    # Layer 2: [tm, 128] @ [128, 64]
    h2 = jnp.dot(h1, w2_ref[...], preferred_element_type=jnp.float32)
    h2 = jnp.maximum(h2 + b2_ref[...], 0.0).astype(jnp.bfloat16)
    # Layer 3: [tm, 64] @ [64, 128]  (output columns padded to a full 128-lane
    # block so the store is unmasked / lane-dense).
    out = jnp.dot(h2, w3_ref[...], preferred_element_type=jnp.float32)
    o_ref[...] = (out + b3_ref[...]).astype(o_ref.dtype)


@functools.partial(jax.jit, static_argnames=("tm",))
def mlp_pallas(x, w1, b1, w2, b2, w3, b3, *, tm=1024):
    B, d_in = x.shape
    h1_dim, h2_dim = w1.shape[1], w2.shape[1]
    n_cls = w3.shape[1]

    LANES = 128
    # ---- wrapper-side layout plumbing (pure zero-padding, sliced off below) --
    d_in_pad = _round_up(d_in, 32)        # 24 -> 32: aligned x rows / W1 sublanes
    n_cls_pad = _round_up(n_cls, LANES)   # 5 -> 128: lane-dense output stores

    # Batch tile: large tiles amortise the ~0.35 us per-grid-step overhead, but
    # cap so a big batch still produces >= 2 grid steps (megacore on v7x).
    # 16-row multiples keep bf16 sublane tiling happy for any tile position.
    tm_eff = min(tm, max(16, _round_up(-(-B // 2), 16)))
    B_pad = _round_up(B, tm_eff)
    grid = (B_pad // tm_eff,)

    # bf16 stream for x + weights (MXU-native); fp32 accumulation in-kernel.
    x_p = jnp.pad(x, ((0, B_pad - B), (0, d_in_pad - d_in))).astype(jnp.bfloat16)
    w1_p = jnp.pad(w1, ((0, d_in_pad - d_in), (0, 0))).astype(jnp.bfloat16)
    w2_p = w2.astype(jnp.bfloat16)
    w3_p = jnp.pad(w3, ((0, 0), (0, n_cls_pad - n_cls))).astype(jnp.bfloat16)
    b1_p = b1.astype(jnp.float32)
    b2_p = b2.astype(jnp.float32)
    b3_p = jnp.pad(b3, ((0, 0), (0, n_cls_pad - n_cls))).astype(jnp.float32)

    # Weights / biases are tiny (<50 KiB total): give every grid step the full
    # tensor.  Constant index_maps => no re-DMA across grid steps.
    full = lambda shape: pl.BlockSpec(shape, lambda i: tuple(0 for _ in shape))

    out = pl.pallas_call(
        mlp_kernel,
        out_shape=jax.ShapeDtypeStruct((B_pad, n_cls_pad), jnp.float32),
        grid_spec=pltpu.PrefetchScalarGridSpec(
            num_scalar_prefetch=0,
            grid=grid,
            in_specs=[
                pl.BlockSpec((tm_eff, d_in_pad), lambda i: (i, 0)),  # x, batch-tiled
                full((d_in_pad, h1_dim)),
                full((1, h1_dim)),
                full((h1_dim, h2_dim)),
                full((1, h2_dim)),
                full((h2_dim, n_cls_pad)),
                full((1, n_cls_pad)),
            ],
            out_specs=pl.BlockSpec((tm_eff, n_cls_pad), lambda i: (i, 0)),
        ),
        compiler_params=pltpu.CompilerParams(
            dimension_semantics=("parallel",),
        ),
    )(x_p, w1_p, b1_p, w2_p, b2_p, w3_p, b3_p)

    # Strip batch padding and the lane padding of the class dimension.
    return out[:B, :n_cls]


def delay_predictor_forward(params, x_cat, x_cont):
    """Full forward pass: embedding gathers (plain-JAX glue) + Pallas MLP."""
    embs = [
        jnp.take(tbl, x_cat[:, i], axis=0)
        for i, tbl in enumerate(params["emb_tables"])
    ]
    x = jnp.concatenate(embs + [x_cont], axis=1).astype(jnp.float32)
    return mlp_pallas(
        x,
        params["w1"], params["b1"],
        params["w2"], params["b2"],
        params["w3"], params["b3"],
    )


def init_params(key, embedding_dims, num_cont_features, num_classes):
    emb_total = sum(e for _, e in embedding_dims)
    d_in = emb_total + num_cont_features
    keys = jax.random.split(key, len(embedding_dims) + 6)

    emb_tables = [
        jax.random.normal(keys[i], (num_cat, emb_dim), dtype=jnp.float32)
        for i, (num_cat, emb_dim) in enumerate(embedding_dims)
    ]
    k = len(embedding_dims)

    def linear(kw, kb, fan_in, fan_out):
        bound = 1.0 / jnp.sqrt(jnp.float32(fan_in))
        w = jax.random.uniform(kw, (fan_in, fan_out), jnp.float32, -bound, bound)
        b = jax.random.uniform(kb, (1, fan_out), jnp.float32, -bound, bound)
        return w, b

    w1, b1 = linear(keys[k + 0], keys[k + 1], d_in, 128)
    w2, b2 = linear(keys[k + 2], keys[k + 3], 128, 64)
    w3, b3 = linear(keys[k + 4], keys[k + 5], 64, num_classes)

    return {
        "emb_tables": emb_tables,
        "w1": w1, "b1": b1,
        "w2": w2, "b2": b2,
        "w3": w3, "b3": b3,
    }


if __name__ == "__main__":
    # Small, deterministic problem consistent with the module's __init__:
    #   embedding_dims = [(10, 8), (7, 4), (5, 4)]  -> emb_total = 16
    #   num_cont_features = 8                       -> D_in = 24
    #   num_classes = 5, batch = 10 (ragged on purpose to exercise padding)
    embedding_dims = [(10, 8), (7, 4), (5, 4)]
    num_cont_features = 8
    num_classes = 5
    batch = 10

    key = jax.random.PRNGKey(0)
    k_params, k_cat, k_cont = jax.random.split(key, 3)

    params = init_params(k_params, embedding_dims, num_cont_features, num_classes)

    cat_keys = jax.random.split(k_cat, len(embedding_dims))
    x_cat = jnp.stack(
        [
            jax.random.randint(cat_keys[i], (batch,), 0, num_cat, dtype=jnp.int32)
            for i, (num_cat, _) in enumerate(embedding_dims)
        ],
        axis=1,
    )  # [B, n_cat_features] int32
    x_cont = jax.random.normal(k_cont, (batch, num_cont_features), dtype=jnp.float32)

    out = delay_predictor_forward(params, x_cat, x_cont)
    out = jax.block_until_ready(out)

    # Pure-JAX reference mimicking the kernel's numerics (bf16 operands, fp32
    # accumulation) so the comparison is tight.
    embs = [jnp.take(t, x_cat[:, i], axis=0) for i, t in enumerate(params["emb_tables"])]
    x = jnp.concatenate(embs + [x_cont], axis=1)
    xb = x.astype(jnp.bfloat16)
    w1b = params["w1"].astype(jnp.bfloat16)
    w2b = params["w2"].astype(jnp.bfloat16)
    w3b = params["w3"].astype(jnp.bfloat16)
    h1 = jnp.maximum(
        jnp.dot(xb, w1b, preferred_element_type=jnp.float32) + params["b1"], 0.0
    ).astype(jnp.bfloat16)
    h2 = jnp.maximum(
        jnp.dot(h1, w2b, preferred_element_type=jnp.float32) + params["b2"], 0.0
    ).astype(jnp.bfloat16)
    ref = jnp.dot(h2, w3b, preferred_element_type=jnp.float32) + params["b3"]

    assert out.shape == (batch, num_classes)
    assert jnp.allclose(out, ref, atol=2e-3, rtol=2e-3)

    print("KERNEL_OK")
</pallas_src>

<mosaic_0001>
module attributes {stable_mosaic.version = 11 : i64} {
  func.func @mlp_kernel(%arg0: i32, %arg1: memref<16x32xbf16, #tpu.memory_space<vmem>>, %arg2: memref<32x128xbf16, #tpu.memory_space<vmem>>, %arg3: memref<1x128xf32, #tpu.memory_space<vmem>>, %arg4: memref<128x64xbf16, #tpu.memory_space<vmem>>, %arg5: memref<1x64xf32, #tpu.memory_space<vmem>>, %arg6: memref<64x128xbf16, #tpu.memory_space<vmem>>, %arg7: memref<1x128xf32, #tpu.memory_space<vmem>>, %arg8: memref<16x128xf32, #tpu.memory_space<vmem>>) attributes {dimension_semantics = [#tpu.dimension_semantics<parallel>], iteration_bounds = array<i64: 1>, scalar_prefetch = 0 : i64, scratch_operands = 0 : i64, tpu.core_type = #tpu.core_type<tc>, window_params = [{transform_indices = @transform_0, window_bounds = array<i64: 16, 32>}, {pipeline_mode = #tpu.pipeline_mode<synchronous>, transform_indices = @transform_1, window_bounds = array<i64: 32, 128>}, {pipeline_mode = #tpu.pipeline_mode<synchronous>, transform_indices = @transform_2, window_bounds = array<i64: 1, 128>}, {pipeline_mode = #tpu.pipeline_mode<synchronous>, transform_indices = @transform_3, window_bounds = array<i64: 128, 64>}, {pipeline_mode = #tpu.pipeline_mode<synchronous>, transform_indices = @transform_4, window_bounds = array<i64: 1, 64>}, {pipeline_mode = #tpu.pipeline_mode<synchronous>, transform_indices = @transform_5, window_bounds = array<i64: 64, 128>}, {pipeline_mode = #tpu.pipeline_mode<synchronous>, transform_indices = @transform_6, window_bounds = array<i64: 1, 128>}, {transform_indices = @transform_7, window_bounds = array<i64: 16, 128>}]} {
    %c0 = arith.constant 0 : index
    %c0_0 = arith.constant 0 : index
    %0 = vector.load %arg1[%c0, %c0_0] : memref<16x32xbf16, #tpu.memory_space<vmem>>, vector<16x32xbf16>
    %c0_1 = arith.constant 0 : index
    %c0_2 = arith.constant 0 : index
    %1 = vector.load %arg2[%c0_1, %c0_2] : memref<32x128xbf16, #tpu.memory_space<vmem>>, vector<32x128xbf16>
    %cst = arith.constant dense<0.000000e+00> : vector<16x128xf32>
    %2 = tpu.matmul %0, %1, %cst {dimension_numbers = #tpu.dot_dimension_numbers<[1], [0], [0], [1], [0, 0, 1, 1], [], []>} : vector<16x32xbf16>, vector<32x128xbf16>, vector<16x128xf32> -> vector<16x128xf32>
    %c0_3 = arith.constant 0 : index
    %c0_4 = arith.constant 0 : index
    %3 = vector.load %arg3[%c0_3, %c0_4] : memref<1x128xf32, #tpu.memory_space<vmem>>, vector<1x128xf32>
    %4 = vector.broadcast %3 : vector<1x128xf32> to vector<16x128xf32>
    %5 = arith.addf %2, %4 : vector<16x128xf32>
    %cst_5 = arith.constant 0.000000e+00 : f32
    %6 = vector.broadcast %cst_5 : f32 to vector<16x128xf32>
    %7 = arith.maximumf %5, %6 : vector<16x128xf32>
    %8 = arith.truncf %7 : vector<16x128xf32> to vector<16x128xbf16>
    %c0_6 = arith.constant 0 : index
    %c0_7 = arith.constant 0 : index
    %9 = vector.load %arg4[%c0_6, %c0_7] : memref<128x64xbf16, #tpu.memory_space<vmem>>, vector<128x64xbf16>
    %cst_8 = arith.constant dense<0.000000e+00> : vector<16x64xf32>
    %10 = tpu.matmul %8, %9, %cst_8 {dimension_numbers = #tpu.dot_dimension_numbers<[1], [0], [0], [1], [0, 0, 1, 1], [], []>} : vector<16x128xbf16>, vector<128x64xbf16>, vector<16x64xf32> -> vector<16x64xf32>
    %c0_9 = arith.constant 0 : index
    %c0_10 = arith.constant 0 : index
    %11 = vector.load %arg5[%c0_9, %c0_10] : memref<1x64xf32, #tpu.memory_space<vmem>>, vector<1x64xf32>
    %12 = vector.broadcast %11 : vector<1x64xf32> to vector<16x64xf32>
    %13 = arith.addf %10, %12 : vector<16x64xf32>
    %cst_11 = arith.constant 0.000000e+00 : f32
    %14 = vector.broadcast %cst_11 : f32 to vector<16x64xf32>
    %15 = arith.maximumf %13, %14 : vector<16x64xf32>
    %16 = arith.truncf %15 : vector<16x64xf32> to vector<16x64xbf16>
    %c0_12 = arith.constant 0 : index
    %c0_13 = arith.constant 0 : index
    %17 = vector.load %arg6[%c0_12, %c0_13] : memref<64x128xbf16, #tpu.memory_space<vmem>>, vector<64x128xbf16>
    %cst_14 = arith.constant dense<0.000000e+00> : vector<16x128xf32>
    %18 = tpu.matmul %16, %17, %cst_14 {dimension_numbers = #tpu.dot_dimension_numbers<[1], [0], [0], [1], [0, 0, 1, 1], [], []>} : vector<16x64xbf16>, vector<64x128xbf16>, vector<16x128xf32> -> vector<16x128xf32>
    %c0_15 = arith.constant 0 : index
    %c0_16 = arith.constant 0 : index
    %19 = vector.load %arg7[%c0_15, %c0_16] : memref<1x128xf32, #tpu.memory_space<vmem>>, vector<1x128xf32>
    %20 = vector.broadcast %19 : vector<1x128xf32> to vector<16x128xf32>
    %21 = arith.addf %18, %20 : vector<16x128xf32>
    %c0_17 = arith.constant 0 : index
    %c0_18 = arith.constant 0 : index
    %22 = vector.load %arg8[%c0_17, %c0_18] : memref<16x128xf32, #tpu.memory_space<vmem>>, vector<16x128xf32>
    tpu.vector_store %arg8[%c0_17, %c0_18], %21 {strides = array<i32>} : memref<16x128xf32, #tpu.memory_space<vmem>>, vector<16x128xf32>,
    return
  }
  func.func @transform_0(%arg0: i32) -> (i32, i32) {
    %c0_i32 = arith.constant 0 : i32
    %c0_i32_0 = arith.constant 0 : i32
    return %arg0, %c0_i32 : i32, i32
  }
  func.func @transform_1(%arg0: i32) -> (i32, i32) {
    %c0_i32 = arith.constant 0 : i32
    %c0_i32_0 = arith.constant 0 : i32
    %c0_i32_1 = arith.constant 0 : i32
    return %c0_i32, %c0_i32_0 : i32, i32
  }
  func.func @transform_2(%arg0: i32) -> (i32, i32) {
    %c0_i32 = arith.constant 0 : i32
    %c0_i32_0 = arith.constant 0 : i32
    %c0_i32_1 = arith.constant 0 : i32
    return %c0_i32, %c0_i32_0 : i32, i32
  }
  func.func @transform_3(%arg0: i32) -> (i32, i32) {
    %c0_i32 = arith.constant 0 : i32
    %c0_i32_0 = arith.constant 0 : i32
    %c0_i32_1 = arith.constant 0 : i32
    return %c0_i32, %c0_i32_0 : i32, i32
  }
  func.func @transform_4(%arg0: i32) -> (i32, i32) {
    %c0_i32 = arith.constant 0 : i32
    %c0_i32_0 = arith.constant 0 : i32
    %c0_i32_1 = arith.constant 0 : i32
    return %c0_i32, %c0_i32_0 : i32, i32
  }
  func.func @transform_5(%arg0: i32) -> (i32, i32) {
    %c0_i32 = arith.constant 0 : i32
    %c0_i32_0 = arith.constant 0 : i32
    %c0_i32_1 = arith.constant 0 : i32
    return %c0_i32, %c0_i32_0 : i32, i32
  }
  func.func @transform_6(%arg0: i32) -> (i32, i32) {
    %c0_i32 = arith.constant 0 : i32
    %c0_i32_0 = arith.constant 0 : i32
    %c0_i32_1 = arith.constant 0 : i32
    return %c0_i32, %c0_i32_0 : i32, i32
  }
  func.func @transform_7(%arg0: i32) -> (i32, i32) {
    %c0_i32 = arith.constant 0 : i32
    %c0_i32_0 = arith.constant 0 : i32
    return %arg0, %c0_i32 : i32, i32
  }
}

</mosaic_0001>

<llo_original>
// kernel: mlp_pallas.1
$region0: #{mlp_pallas.1}
  #allocation0 [shape = 'u32[]', space=smem, size = 0x4, offset = 0x4, fixed_abs, tag = 'smem constant byte address 0x4 - core index']
  #allocation1 [shape = 'u32[144,128]{1,0:T(1,128)}', space=vmem, size = 0x12000, scoped, tag = 'internal scratch']
  %s0 = inlined_call_operand.vmem [shape: bf16[16,32], index: 0, kind: input, shape index: {}]
  %s1 = inlined_call_operand.vmem [shape: bf16[32,128], index: 1, kind: input, shape index: {}]
  %s2 = inlined_call_operand.vmem [shape: f32[1,128], index: 2, kind: input, shape index: {}]
  %s3 = inlined_call_operand.vmem [shape: bf16[128,64], index: 3, kind: input, shape index: {}]
  %s4 = inlined_call_operand.vmem [shape: f32[1,64], index: 4, kind: input, shape index: {}]
  %s5 = inlined_call_operand.vmem [shape: bf16[64,128], index: 5, kind: input, shape index: {}]
  %s6 = inlined_call_operand.vmem [shape: f32[1,128], index: 6, kind: input, shape index: {}]
  %s7 = inlined_call_operand.vmem [shape: f32[16,128], index: 7, kind: output, shape index: {}]
  %s8 = sld [smem:[#allocation0]]
  $region38: #{mlp_pallas.1} parent=0
    _
  %s10 = ssub.s32 1, %s8
  %s11 = scalar_select 0, %s10, %s8
  // Predicated region
  $region2: #{mlp_pallas.1} parent=0 // pred_check
    _
  $region3: #{mlp_pallas.1} parent=0 // pred_check_branch
    %13 = sbr.rel (0) target = $region5
  $region4: #{mlp_pallas.1} parent=0 // pred_region
    _
  $region5: #{mlp_pallas.1} parent=0 // pred_fallthru
    _
  // Predicated region
  $region6: #{mlp_pallas.1} parent=0 // pred_check
    _
  $region7: #{mlp_pallas.1} parent=0 // pred_check_branch
    %15 = sbr.rel (0) target = $region9
  $region8: #{mlp_pallas.1} parent=0 // pred_region
    _
  $region9: #{mlp_pallas.1} parent=0 // pred_fallthru
    _
  // Predicated region
  $region10: #{mlp_pallas.1} parent=0 // pred_check
    _
  $region11: #{mlp_pallas.1} parent=0 // pred_check_branch
    %17 = sbr.rel (0) target = $region13
  $region12: #{mlp_pallas.1} parent=0 // pred_region
    _
  $region13: #{mlp_pallas.1} parent=0 // pred_fallthru
    _
  // Predicated region
  $region14: #{mlp_pallas.1} parent=0 // pred_check
    _
  $region15: #{mlp_pallas.1} parent=0 // pred_check_branch
    %19 = sbr.rel (0) target = $region17
  $region16: #{mlp_pallas.1} parent=0 // pred_region
    _
  $region17: #{mlp_pallas.1} parent=0 // pred_fallthru
    _
  // Predicated region
  $region18: #{mlp_pallas.1} parent=0 // pred_check
    _
  $region19: #{mlp_pallas.1} parent=0 // pred_check_branch
    %21 = sbr.rel (0) target = $region21
  $region20: #{mlp_pallas.1} parent=0 // pred_region
    _
  $region21: #{mlp_pallas.1} parent=0 // pred_fallthru
    _
  // Predicated region
  $region22: #{mlp_pallas.1} parent=0 // pred_check
    _
  $region23: #{mlp_pallas.1} parent=0 // pred_check_branch
    %23 = sbr.rel (0) target = $region25
  $region24: #{mlp_pallas.1} parent=0 // pred_region
    _
  $region25: #{mlp_pallas.1} parent=0 // pred_fallthru
    _
  // Predicated region
  $region26: #{mlp_pallas.1} parent=0 // pred_check
    _
  $region27: #{mlp_pallas.1} parent=0 // pred_check_branch
    %25 = sbr.rel (0) target = $region29
  $region28: #{mlp_pallas.1} parent=0 // pred_region
    _
  $region29: #{mlp_pallas.1} parent=0 // pred_fallthru
    _
  %v27 = vld [vmem:[%s0] sm:$0xf]
  %v28 = vld [vmem:[%s0 + $0x4] sm:$0xf]
  %v29 = vld [vmem:[%s1] sm:$0xf]
  %v30 = vld [vmem:[%s1 + $0x4] sm:$0xf]
  %v31 = vld [vmem:[%s1 + $0x8] sm:$0xf]
  %v32 = vld [vmem:[%s1 + $0xc] sm:$0xf]
  %v33 = vld [vmem:[%s2] sm:$0x1]
  %v35 = vlaneseq
  %v36 = vshrl.u32 %v35, 7
  %v37 = vsub.s32 0, %v36
  %v38 = vrot.slane %v33, %v37
  %v42 = vunpack.c.l.b16 %v27
  %v43 = vunpack.c.l.b16 %v28
  %v44 = vpack.c.b16 %v43, %v42
  %v49 = vunpack.c.l.b16 %v29
  %v50 = vunpack.c.l.b16 %v30
  %v51 = vunpack.c.l.b16 %v31
  %v52 = vunpack.c.l.b16 %v32
  %v53 = vpack.c.b16 %v50, %v49
  %v54 = vpack.c.b16 %v52, %v51
  %vm57 = vcmask 261120
  %v59 = vsel %vm57, %v44, 0
  %61 = vmatprep.subr.bf16.mxu0 0
  %62 = vmatpush1.bf16.msra.mxu0 %v53
  %63 = vmatprep.subr.bf16.mxu0 0
  %64 = vmatpush1.bf16.msra.mxu0 %v54
  %65 = vmatprep.subr.bf16.mxu0 0
  %66 = vmatpush1.bf16.msra.mxu0 0
  %67 = vmatprep.subr.bf16.mxu0 0
  %68 = vmatpush1.bf16.msra.mxu0 0
  %69 = vmatprep.subr.bf16.mxu0 0
  %70 = vmatpush1.bf16.msra.mxu0 0
  %71 = vmatprep.subr.bf16.mxu0 0
  %72 = vmatpush1.bf16.msra.mxu0 0
  %73 = vmatprep.subr.bf16.mxu0 0
  %74 = vmatpush1.bf16.msra.mxu0 0
  %75 = vmatprep.subr.bf16.mxu0 0
  %76 = vmatpush1.bf16.msra.mxu0 0
  %77 = vmatprep.subr.bf16.mxu0 0
  %78 = vmatpush1.bf16.msra.mxu0 0
  %79 = vmatprep.subr.bf16.mxu0 0
  %80 = vmatpush1.bf16.msra.mxu0 0
  %81 = vmatprep.subr.bf16.mxu0 0
  %82 = vmatpush1.bf16.msra.mxu0 0
  %83 = vmatprep.subr.bf16.mxu0 0
  %84 = vmatpush1.bf16.msra.mxu0 0
  %85 = vmatprep.subr.bf16.mxu0 0
  %86 = vmatpush1.bf16.msra.mxu0 0
  %87 = vmatprep.subr.bf16.mxu0 0
  %88 = vmatpush1.bf16.msra.mxu0 0
  %89 = vmatprep.subr.bf16.mxu0 0
  %90 = vmatpush1.bf16.msra.mxu0 0
  %91 = vmatprep.subr.bf16.mxu0 0
  %92 = vmatpush1.bf16.msra.mxu0 0
  %93 = vmatprep.mubr.bf16.mxu0 0
  %94 = vmatmul.mubr.bf16.gmra.mrb[0].mxu0 %v59
  %v95 = vpop.f32.mrb[0].mxu0
  %v96 = vadd.f32 %v38, %v95
  %v97 = vpop.f32.mrb[0].mxu0
  %v98 = vpop.f32.mrb[0].mxu0
  %v99 = vadd.f32 %v38, %v98
  %v100 = vpop.f32.mrb[0].mxu0
  %101 = vdwg.mxu0
  %v102 = vmax.f32 %v96, 0.0
  %v103 = vmax.f32 %v99, 0.0
  %v104 = vpack.c.bf16 %v103, %v102
  %v105 = vld [vmem:[%s3] sm:$0xf]
  %v106 = vld [vmem:[%s3 + $0x4] sm:$0xf]
  %v107 = vld [vmem:[%s3 + $0x8] sm:$0xf]
  %v108 = vld [vmem:[%s3 + $0xc] sm:$0xf]
  %v109 = vld [vmem:[%s3 + $0x10] sm:$0xf]
  %v110 = vld [vmem:[%s3 + $0x14] sm:$0xf]
  %v111 = vld [vmem:[%s3 + $0x18] sm:$0xf]
  %v112 = vld [vmem:[%s3 + $0x1c] sm:$0xf]
  %v113 = vld [vmem:[%s3 + $0x20] sm:$0xf]
  %v114 = vld [vmem:[%s3 + $0x24] sm:$0xf]
  %v115 = vld [vmem:[%s3 + $0x28] sm:$0xf]
  %v116 = vld [vmem:[%s3 + $0x2c] sm:$0xf]
  %v117 = vld [vmem:[%s3 + $0x30] sm:$0xf]
  %v118 = vld [vmem:[%s3 + $0x34] sm:$0xf]
  %v119 = vld [vmem:[%s3 + $0x38] sm:$0xf]
  %v120 = vld [vmem:[%s3 + $0x3c] sm:$0xf]
  %v121 = vld [vmem:[%s4] sm:$0x1]
  %v123 = vlaneseq
  %v124 = vshrl.u32 %v123, 7
  %v125 = vsub.s32 0, %v124
  %v126 = vrot.slane %v121, %v125
  %v144 = vunpack.c.l.b16 %v105
  %v145 = vunpack.c.l.b16 %v106
  %v146 = vunpack.c.l.b16 %v107
  %v147 = vunpack.c.l.b16 %v108
  %v148 = vunpack.c.l.b16 %v109
  %v149 = vunpack.c.l.b16 %v110
  %v150 = vunpack.c.l.b16 %v111
  %v151 = vunpack.c.l.b16 %v112
  %v152 = vunpack.c.l.b16 %v113
  %v153 = vunpack.c.l.b16 %v114
  %v154 = vunpack.c.l.b16 %v115
  %v155 = vunpack.c.l.b16 %v116
  %v156 = vunpack.c.l.b16 %v117
  %v157 = vunpack.c.l.b16 %v118
  %v158 = vunpack.c.l.b16 %v119
  %v159 = vunpack.c.l.b16 %v120
  %v160 = vpack.c.b16 %v145, %v144
  %v161 = vpack.c.b16 %v147, %v146
  %v162 = vpack.c.b16 %v149, %v148
  %v163 = vpack.c.b16 %v151, %v150
  %v164 = vpack.c.b16 %v153, %v152
  %v165 = vpack.c.b16 %v155, %v154
  %v166 = vpack.c.b16 %v157, %v156
  %v167 = vpack.c.b16 %v159, %v158
  %176 = vmatprep.subr.bf16.mxu0 0
  %177 = vmatpush1.bf16.msra.mxu0 %v160
  %178 = vmatprep.subr.bf16.mxu0 0
  %179 = vmatpush1.bf16.msra.mxu0 %v161
  %180 = vmatprep.subr.bf16.mxu0 0
  %181 = vmatpush1.bf16.msra.mxu0 %v162
  %182 = vmatprep.subr.bf16.mxu0 0
  %183 = vmatpush1.bf16.msra.mxu0 %v163
  %184 = vmatprep.subr.bf16.mxu0 0
  %185 = vmatpush1.bf16.msra.mxu0 %v164
  %186 = vmatprep.subr.bf16.mxu0 0
  %187 = vmatpush1.bf16.msra.mxu0 %v165
  %188 = vmatprep.subr.bf16.mxu0 0
  %189 = vmatpush1.bf16.msra.mxu0 %v166
  %190 = vmatprep.subr.bf16.mxu0 0
  %191 = vmatpush1.bf16.msra.mxu0 %v167
  %192 = vmatprep.subr.bf16.mxu0 0
  %193 = vmatpush1.bf16.msra.mxu0 0
  %194 = vmatprep.subr.bf16.mxu0 0
  %195 = vmatpush1.bf16.msra.mxu0 0
  %196 = vmatprep.subr.bf16.mxu0 0
  %197 = vmatpush1.bf16.msra.mxu0 0
  %198 = vmatprep.subr.bf16.mxu0 0
  %199 = vmatpush1.bf16.msra.mxu0 0
  %200 = vmatprep.subr.bf16.mxu0 0
  %201 = vmatpush1.bf16.msra.mxu0 0
  %202 = vmatprep.subr.bf16.mxu0 0
  %203 = vmatpush1.bf16.msra.mxu0 0
  %204 = vmatprep.subr.bf16.mxu0 0
  %205 = vmatpush1.bf16.msra.mxu0 0
  %206 = vmatprep.subr.bf16.mxu0 0
  %207 = vmatpush1.bf16.msra.mxu0 0
  %208 = vmatprep.mubr.bf16.mxu0 0
  %209 = vmatmul.mubr.bf16.gmra.mrb[0].mxu0 %v104
  %v210 = vpop.f32.mrb[0].mxu0
  %v211 = vadd.f32 %v126, %v210
  %v212 = vpop.f32.mrb[0].mxu0
  %v213 = vpop.f32.mrb[0].mxu0
  %v214 = vadd.f32 %v126, %v213
  %v215 = vpop.f32.mrb[0].mxu0
  %216 = vdwg.mxu0
  %v217 = vmax.f32 %v211, 0.0
  %v218 = vmax.f32 %v214, 0.0
  %v219 = vpack.c.bf16 %v218, %v217
  %v220 = vld [vmem:[%s5] sm:$0xf]
  %v221 = vld [vmem:[%s5 + $0x4] sm:$0xf]
  %v222 = vld [vmem:[%s5 + $0x8] sm:$0xf]
  %v223 = vld [vmem:[%s5 + $0xc] sm:$0xf]
  %v224 = vld [vmem:[%s5 + $0x10] sm:$0xf]
  %v225 = vld [vmem:[%s5 + $0x14] sm:$0xf]
  %v226 = vld [vmem:[%s5 + $0x18] sm:$0xf]
  %v227 = vld [vmem:[%s5 + $0x1c] sm:$0xf]
  %v228 = vld [vmem:[%s6] sm:$0x1]
  %v230 = vlaneseq
  %v231 = vshrl.u32 %v230, 7
  %v232 = vsub.s32 0, %v231
  %v233 = vrot.slane %v228, %v232
  %v243 = vunpack.c.l.b16 %v220
  %v244 = vunpack.c.l.b16 %v221
  %v245 = vunpack.c.l.b16 %v222
  %v246 = vunpack.c.l.b16 %v223
  %v247 = vunpack.c.l.b16 %v224
  %v248 = vunpack.c.l.b16 %v225
  %v249 = vunpack.c.l.b16 %v226
  %v250 = vunpack.c.l.b16 %v227
  %v251 = vpack.c.b16 %v244, %v243
  %v252 = vpack.c.b16 %v246, %v245
  %v253 = vpack.c.b16 %v248, %v247
  %v254 = vpack.c.b16 %v250, %v249
  %vm259 = vcmask 523264
  %v261 = vsel %vm259, %v219, 0
  %263 = vmatprep.subr.bf16.mxu0 0
  %264 = vmatpush1.bf16.msra.mxu0 %v251
  %265 = vmatprep.subr.bf16.mxu0 0
  %266 = vmatpush1.bf16.msra.mxu0 %v252
  %267 = vmatprep.subr.bf16.mxu0 0
  %268 = vmatpush1.bf16.msra.mxu0 %v253
  %269 = vmatprep.subr.bf16.mxu0 0
  %270 = vmatpush1.bf16.msra.mxu0 %v254
  %271 = vmatprep.subr.bf16.mxu0 0
  %272 = vmatpush1.bf16.msra.mxu0 0
  %273 = vmatprep.subr.bf16.mxu0 0
  %274 = vmatpush1.bf16.msra.mxu0 0
  %275 = vmatprep.subr.bf16.mxu0 0
  %276 = vmatpush1.bf16.msra.mxu0 0
  %277 = vmatprep.subr.bf16.mxu0 0
  %278 = vmatpush1.bf16.msra.mxu0 0
  %279 = vmatprep.subr.bf16.mxu0 0
  %280 = vmatpush1.bf16.msra.mxu0 0
  %281 = vmatprep.subr.bf16.mxu0 0
  %282 = vmatpush1.bf16.msra.mxu0 0
  %283 = vmatprep.subr.bf16.mxu0 0
  %284 = vmatpush1.bf16.msra.mxu0 0
  %285 = vmatprep.subr.bf16.mxu0 0
  %286 = vmatpush1.bf16.msra.mxu0 0
  %287 = vmatprep.subr.bf16.mxu0 0
  %288 = vmatpush1.bf16.msra.mxu0 0
  %289 = vmatprep.subr.bf16.mxu0 0
  %290 = vmatpush1.bf16.msra.mxu0 0
  %291 = vmatprep.subr.bf16.mxu0 0
  %292 = vmatpush1.bf16.msra.mxu0 0
  %293 = vmatprep.subr.bf16.mxu0 0
  %294 = vmatpush1.bf16.msra.mxu0 0
  %295 = vmatprep.mubr.bf16.mxu0 0
  %296 = vmatmul.mubr.bf16.gmra.mrb[0].mxu0 %v261
  %v297 = vpop.f32.mrb[0].mxu0
  %v298 = vadd.f32 %v233, %v297
  %v299 = vpop.f32.mrb[0].mxu0
  %v300 = vpop.f32.mrb[0].mxu0
  %v301 = vadd.f32 %v233, %v300
  %v302 = vpop.f32.mrb[0].mxu0
  %303 = vdwg.mxu0
  %304 = vst [vmem:[%s7] sm:$0xff] %v298
  %305 = vst [vmem:[%s7 + $0x8] sm:$0xff] %v301
  // Predicated region
  $region30: #{mlp_pallas.1} parent=0 // pred_check
    _
  $region31: #{mlp_pallas.1} parent=0 // pred_check_branch
    %307 = sbr.rel (0) target = $region33
  $region32: #{mlp_pallas.1} parent=0 // pred_region
    _
  $region33: #{mlp_pallas.1} parent=0 // pred_fallthru
    _
  // Predicated region
  $region34: #{mlp_pallas.1} parent=0 // pred_check
    _
  $region35: #{mlp_pallas.1} parent=0 // pred_check_branch
    %309 = sbr.rel (0) target = $region37
  $region36: #{mlp_pallas.1} parent=0 // pred_region
    _
  $region37: #{mlp_pallas.1} parent=0 // pred_fallthru
    _

</llo_original>
